<compile_context>
chip_gen: v6e
topology: v6e:2x2x1
jax: 0.10.0
libtpu: 0.0.40
codegen_flags: <defaults>
</compile_context>

<pallas_src>
import jax
import jax.numpy as jnp
from jax.experimental import pallas as pl
from jax.experimental.pallas import tpu as pltpu

_NEG_BIG = -1e30  # pads b2 so padded output columns softmax to exactly 0
_LANE = 128


def _two_layer_nn_kernel(x_ref, w1_ref, b1_ref, w2_ref, b2_ref, o_ref):
    """Fused two-layer MLP + softmax over one (TB, ...) batch tile.

    x_ref  : (TB, I)   f32   (cast to bf16 in-kernel for the MXU)
    w1_ref : (I, Hp)   bf16  (hidden width zero-padded to 128)
    b1_ref : (1, Hp)   f32
    w2_ref : (Hp, Op)  bf16  (output width padded to 128; pad cols are zero)
    b2_ref : (1, Op)   f32   (pad entries are a huge negative value)
    o_ref  : (TB, Op)  bf16  (softmax math stays f32; cast only on store)
    """
    # Hidden linear: in-kernel bf16 cast, MXU matmul with f32 accumulation.
    x = x_ref[...].astype(jnp.bfloat16)
    h = jnp.dot(x, w1_ref[...], preferred_element_type=jnp.float32)
    h = h + b1_ref[...]
    a = jnp.maximum(h, 0.0).astype(jnp.bfloat16)         # back to bf16 for MXU

    # Output linear.
    logits = jnp.dot(a, w2_ref[...], preferred_element_type=jnp.float32)
    logits = logits + b2_ref[...]                         # pad cols -> ~-1e30

    # Numerically-stable softmax over the lane-dense (padded) feature axis.
    # Exact division (not approx reciprocal) so row sums are 1 to f32 accuracy.
    m = jnp.max(logits, axis=1, keepdims=True)
    e = jnp.exp(logits - m)                               # padded cols exp to 0
    denom = jnp.sum(e, axis=1, keepdims=True)
    o_ref[...] = (e / denom).astype(o_ref.dtype)


def prepare_two_layer_params(w1, b1, w2, b2):
    """One-time pad+cast of the module parameters (amortized across calls).

    w1 (I, H), b1 (H,), w2 (H, O), b2 (O,)  ->  dict of padded device arrays.
    """
    I, H = w1.shape
    O = w2.shape[1]
    Hp = max(_LANE, pl.cdiv(H, _LANE) * _LANE)
    Op = max(_LANE, pl.cdiv(O, _LANE) * _LANE)

    w1p = jnp.zeros((I, Hp), jnp.bfloat16).at[:, :H].set(w1.astype(jnp.bfloat16))
    b1p = jnp.zeros((1, Hp), jnp.float32).at[0, :H].set(b1.astype(jnp.float32))
    w2p = jnp.zeros((Hp, Op), jnp.bfloat16).at[:H, :O].set(w2.astype(jnp.bfloat16))
    b2p = jnp.full((1, Op), _NEG_BIG, jnp.float32).at[0, :O].set(
        b2.astype(jnp.float32))
    return {"w1p": w1p, "b1p": b1p, "w2p": w2p, "b2p": b2p, "out_features": O}


def two_layer_nn_apply(x, params, *, block_b=1024, out_dtype=jnp.bfloat16):
    """x (B, I) f32 + prepared params -> (B, O) probabilities (out_dtype)."""
    B, I = x.shape
    w1p, b1p = params["w1p"], params["b1p"]
    w2p, b2p = params["w2p"], params["b2p"]
    O = params["out_features"]
    Hp = w1p.shape[1]
    Op = w2p.shape[1]

    # Batch tile: whole batch in one step when it fits; otherwise big
    # sublane-aligned tiles.  Ragged last tile is masked by Pallas on store.
    if B <= block_b:
        TB = B
    else:
        TB = max(8, (block_b // 8) * 8)
    grid = (pl.cdiv(B, TB),)

    out_itemsize = jnp.dtype(out_dtype).itemsize
    cost = pl.CostEstimate(
        flops=2 * B * (I * Hp + Hp * Op),
        transcendentals=B * Op,
        bytes_accessed=(B * I * jnp.dtype(x.dtype).itemsize
                        + B * Op * out_itemsize
                        + I * Hp * 2 + Hp * Op * 2 + Hp * 4 + Op * 4),
    )

    out_padded = pl.pallas_call(
        _two_layer_nn_kernel,
        out_shape=jax.ShapeDtypeStruct((B, Op), out_dtype),
        grid_spec=pltpu.PrefetchScalarGridSpec(
            num_scalar_prefetch=0,
            grid=grid,
            in_specs=[
                pl.BlockSpec((TB, I), lambda i: (i, 0)),    # x: streamed tiles
                pl.BlockSpec((I, Hp), lambda i: (0, 0)),    # W1: resident
                pl.BlockSpec((1, Hp), lambda i: (0, 0)),    # b1: resident
                pl.BlockSpec((Hp, Op), lambda i: (0, 0)),   # W2: resident
                pl.BlockSpec((1, Op), lambda i: (0, 0)),    # b2: resident
            ],
            out_specs=pl.BlockSpec((TB, Op), lambda i: (i, 0)),
        ),
        compiler_params=pltpu.CompilerParams(
            dimension_semantics=("parallel",),
        ),
        cost_estimate=cost,
    )(x.astype(jnp.float32), w1p, b1p, w2p, b2p)

    return out_padded[:, :O]


def two_layer_nn(x, w1, b1, w2, b2, **kwargs):
    """Convenience one-shot API (prep is amortized via prepare_* for loops)."""
    params = prepare_two_layer_params(w1, b1, w2, b2)
    return two_layer_nn_apply(x, params, **kwargs)


def init_linear_params(key, in_features, out_features):
    """Deterministic init mimicking torch.nn.Linear (uniform +-1/sqrt(in)).
    Returns weight already transposed to (in, out)."""
    kw, kb = jax.random.split(key)
    bound = 1.0 / jnp.sqrt(jnp.float32(in_features))
    w = jax.random.uniform(kw, (in_features, out_features), jnp.float32,
                           minval=-bound, maxval=bound)
    b = jax.random.uniform(kb, (out_features,), jnp.float32,
                           minval=-bound, maxval=bound)
    return w, b


if __name__ == "__main__":
    # Shapes consistent with an MNIST-style TwoLayerNN:
    #   input_n=64, hidden_n=32, output_n=10; batch 256 (one grid step).
    B, INPUT_N, HIDDEN_N, OUTPUT_N = 256, 64, 32, 10

    key = jax.random.PRNGKey(0)
    kx, k1, k2 = jax.random.split(key, 3)

    x = jax.random.normal(kx, (B, INPUT_N), jnp.float32)
    w1, b1 = init_linear_params(k1, INPUT_N, HIDDEN_N)
    w2, b2 = init_linear_params(k2, HIDDEN_N, OUTPUT_N)

    # Pad/cast parameters ONCE (amortized for inference loops).
    params = prepare_two_layer_params(w1, b1, w2, b2)

    out = jax.block_until_ready(two_layer_nn_apply(x, params))
    assert out.shape == (B, OUTPUT_N)
    out_f32 = out.astype(jnp.float32)

    # Reference following the same bf16-input / f32-accumulate path.
    xb = x.astype(jnp.bfloat16).astype(jnp.float32)
    w1b = w1.astype(jnp.bfloat16).astype(jnp.float32)
    w2b = w2.astype(jnp.bfloat16).astype(jnp.float32)
    h_ref = jnp.maximum(xb @ w1b + b1, 0.0)
    hb = h_ref.astype(jnp.bfloat16).astype(jnp.float32)
    ref_bf16 = jax.nn.softmax(hb @ w2b + b2, axis=1)

    # Pure-f32 module semantics (looser tolerance due to bf16 weights/acts).
    ref_f32 = jax.nn.softmax(jnp.maximum(x @ w1 + b1, 0.0) @ w2 + b2, axis=1)

    # Row sums: exact-division softmax; only bf16 output quantization (~2e-3).
    assert jnp.allclose(jnp.sum(out_f32, axis=1), 1.0, atol=5e-3)
    assert jnp.allclose(out_f32, ref_bf16, atol=1e-2, rtol=1e-2)
    assert jnp.allclose(out_f32, ref_f32, atol=3e-2, rtol=5e-2)

    print("KERNEL_OK")
</pallas_src>

<mosaic_0001>
module attributes {stable_mosaic.version = 11 : i64} {
  func.func @_two_layer_nn_kernel(%arg0: i32, %arg1: memref<256x64xf32, #tpu.memory_space<vmem>>, %arg2: memref<64x128xbf16, #tpu.memory_space<vmem>>, %arg3: memref<1x128xf32, #tpu.memory_space<vmem>>, %arg4: memref<128x128xbf16, #tpu.memory_space<vmem>>, %arg5: memref<1x128xf32, #tpu.memory_space<vmem>>, %arg6: memref<256x128xbf16, #tpu.memory_space<vmem>>) attributes {dimension_semantics = [#tpu.dimension_semantics<parallel>], iteration_bounds = array<i64: 1>, scalar_prefetch = 0 : i64, scratch_operands = 0 : i64, tpu.core_type = #tpu.core_type<tc>, window_params = [{transform_indices = @transform_0, window_bounds = array<i64: 256, 64>}, {pipeline_mode = #tpu.pipeline_mode<synchronous>, transform_indices = @transform_1, window_bounds = array<i64: 64, 128>}, {pipeline_mode = #tpu.pipeline_mode<synchronous>, transform_indices = @transform_2, window_bounds = array<i64: 1, 128>}, {pipeline_mode = #tpu.pipeline_mode<synchronous>, transform_indices = @transform_3, window_bounds = array<i64: 128, 128>}, {pipeline_mode = #tpu.pipeline_mode<synchronous>, transform_indices = @transform_4, window_bounds = array<i64: 1, 128>}, {transform_indices = @transform_5, window_bounds = array<i64: 256, 128>}]} {
    %c0 = arith.constant 0 : index
    %c0_0 = arith.constant 0 : index
    %0 = vector.load %arg1[%c0, %c0_0] : memref<256x64xf32, #tpu.memory_space<vmem>>, vector<256x64xf32>
    %1 = arith.truncf %0 : vector<256x64xf32> to vector<256x64xbf16>
    %c0_1 = arith.constant 0 : index
    %c0_2 = arith.constant 0 : index
    %2 = vector.load %arg2[%c0_1, %c0_2] : memref<64x128xbf16, #tpu.memory_space<vmem>>, vector<64x128xbf16>
    %cst = arith.constant dense<0.000000e+00> : vector<256x128xf32>
    %3 = tpu.matmul %1, %2, %cst {dimension_numbers = #tpu.dot_dimension_numbers<[1], [0], [0], [1], [0, 0, 1, 1], [], []>} : vector<256x64xbf16>, vector<64x128xbf16>, vector<256x128xf32> -> vector<256x128xf32>
    %c0_3 = arith.constant 0 : index
    %c0_4 = arith.constant 0 : index
    %4 = vector.load %arg3[%c0_3, %c0_4] : memref<1x128xf32, #tpu.memory_space<vmem>>, vector<1x128xf32>
    %5 = vector.broadcast %4 : vector<1x128xf32> to vector<256x128xf32>
    %6 = arith.addf %3, %5 : vector<256x128xf32>
    %cst_5 = arith.constant 0.000000e+00 : f32
    %7 = vector.broadcast %cst_5 : f32 to vector<256x128xf32>
    %8 = arith.maximumf %6, %7 : vector<256x128xf32>
    %9 = arith.truncf %8 : vector<256x128xf32> to vector<256x128xbf16>
    %c0_6 = arith.constant 0 : index
    %c0_7 = arith.constant 0 : index
    %10 = vector.load %arg4[%c0_6, %c0_7] : memref<128x128xbf16, #tpu.memory_space<vmem>>, vector<128x128xbf16>
    %cst_8 = arith.constant dense<0.000000e+00> : vector<256x128xf32>
    %11 = tpu.matmul %9, %10, %cst_8 {dimension_numbers = #tpu.dot_dimension_numbers<[1], [0], [0], [1], [0, 0, 1, 1], [], []>} : vector<256x128xbf16>, vector<128x128xbf16>, vector<256x128xf32> -> vector<256x128xf32>
    %c0_9 = arith.constant 0 : index
    %c0_10 = arith.constant 0 : index
    %12 = vector.load %arg5[%c0_9, %c0_10] : memref<1x128xf32, #tpu.memory_space<vmem>>, vector<1x128xf32>
    %13 = vector.broadcast %12 : vector<1x128xf32> to vector<256x128xf32>
    %14 = arith.addf %11, %13 : vector<256x128xf32>
    %cst_11 = arith.constant dense<0xFF800000> : vector<256xf32>
    %15 = vector.multi_reduction <maximumf>, %14, %cst_11 [1] : vector<256x128xf32> to vector<256xf32>
    %16 = vector.shape_cast %15 : vector<256xf32> to vector<256x1xf32>
    %17 = vector.broadcast %16 : vector<256x1xf32> to vector<256x128xf32>
    %18 = arith.subf %14, %17 : vector<256x128xf32>
    %19 = math.exp %18 : vector<256x128xf32>
    %cst_12 = arith.constant dense<0.000000e+00> : vector<256xf32>
    %20 = vector.multi_reduction <add>, %19, %cst_12 [1] : vector<256x128xf32> to vector<256xf32>
    %21 = vector.shape_cast %20 : vector<256xf32> to vector<256x1xf32>
    %22 = vector.broadcast %21 : vector<256x1xf32> to vector<256x128xf32>
    %23 = arith.divf %19, %22 : vector<256x128xf32>
    %24 = arith.truncf %23 : vector<256x128xf32> to vector<256x128xbf16>
    %c0_13 = arith.constant 0 : index
    %c0_14 = arith.constant 0 : index
    %25 = vector.load %arg6[%c0_13, %c0_14] : memref<256x128xbf16, #tpu.memory_space<vmem>>, vector<256x128xbf16>
    tpu.vector_store %arg6[%c0_13, %c0_14], %24 {strides = array<i32>} : memref<256x128xbf16, #tpu.memory_space<vmem>>, vector<256x128xbf16>,
    return
  }
  func.func @transform_0(%arg0: i32) -> (i32, i32) {
    %c0_i32 = arith.constant 0 : i32
    %c0_i32_0 = arith.constant 0 : i32
    return %arg0, %c0_i32 : i32, i32
  }
  func.func @transform_1(%arg0: i32) -> (i32, i32) {
    %c0_i32 = arith.constant 0 : i32
    %c0_i32_0 = arith.constant 0 : i32
    %c0_i32_1 = arith.constant 0 : i32
    return %c0_i32, %c0_i32_0 : i32, i32
  }
  func.func @transform_2(%arg0: i32) -> (i32, i32) {
    %c0_i32 = arith.constant 0 : i32
    %c0_i32_0 = arith.constant 0 : i32
    %c0_i32_1 = arith.constant 0 : i32
    return %c0_i32, %c0_i32_0 : i32, i32
  }
  func.func @transform_3(%arg0: i32) -> (i32, i32) {
    %c0_i32 = arith.constant 0 : i32
    %c0_i32_0 = arith.constant 0 : i32
    %c0_i32_1 = arith.constant 0 : i32
    return %c0_i32, %c0_i32_0 : i32, i32
  }
  func.func @transform_4(%arg0: i32) -> (i32, i32) {
    %c0_i32 = arith.constant 0 : i32
    %c0_i32_0 = arith.constant 0 : i32
    %c0_i32_1 = arith.constant 0 : i32
    return %c0_i32, %c0_i32_0 : i32, i32
  }
  func.func @transform_5(%arg0: i32) -> (i32, i32) {
    %c0_i32 = arith.constant 0 : i32
    %c0_i32_0 = arith.constant 0 : i32
    return %arg0, %c0_i32 : i32, i32
  }
}

</mosaic_0001>

<llo_original>
// kernel: tpu_custom_call.1
$region0: #{tpu_custom_call.1}
  #allocation0 [shape = 'u32[]', space=smem, size = 0x4, offset = 0x4, fixed_abs, tag = 'smem constant byte address 0x4 - core index']
  #allocation1 [shape = 'u32[144,128]{1,0:T(1,128)}', space=vmem, size = 0x12000, scoped, tag = 'internal scratch']
  %s0 = inlined_call_operand.vmem [shape: f32[256,64], index: 0, kind: input, shape index: {}]
  %s1 = inlined_call_operand.vmem [shape: bf16[64,128], index: 1, kind: input, shape index: {}]
  %s2 = inlined_call_operand.vmem [shape: f32[1,128], index: 2, kind: input, shape index: {}]
  %s3 = inlined_call_operand.vmem [shape: bf16[128,128], index: 3, kind: input, shape index: {}]
  %s4 = inlined_call_operand.vmem [shape: f32[1,128], index: 4, kind: input, shape index: {}]
  %s5 = inlined_call_operand.hbm [shape: bf16[256,128], index: 5, kind: output, shape index: {}]
  %s6 = sld [smem:[#allocation0]]
  $region30: #{tpu_custom_call.1} parent=0
    _
  %s8 = ssub.s32 1, %s6
  %s9 = scalar_select 0, %s8, %s6
  $region1: #{tpu_custom_call.1} parent=0
    #allocation2 [shape = 'u8[65536]{0}', space=vmem, size = 0x10000, scoped, tag = 'output window, operand 0, single buffered']
    #allocation3 [shape = 's32[1]{0}', space=sflag, size = 0x4, scoped, tag = 'scoped memory for tpu_custom_call.1']
    %10 = vsyncpa [#allocation3], 0
    // Predicated region
    $region2: #{tpu_custom_call.1} parent=1 // pred_check
      _
    $region3: #{tpu_custom_call.1} parent=1 // pred_check_branch
      %12 = sbr.rel (0) target = $region5
    $region4: #{tpu_custom_call.1} parent=1 // pred_region
      _
    $region5: #{tpu_custom_call.1} parent=1 // pred_fallthru
      _
    // Predicated region
    $region6: #{tpu_custom_call.1} parent=1 // pred_check
      _
    $region7: #{tpu_custom_call.1} parent=1 // pred_check_branch
      %14 = sbr.rel (0) target = $region9
    $region8: #{tpu_custom_call.1} parent=1 // pred_region
      _
    $region9: #{tpu_custom_call.1} parent=1 // pred_fallthru
      _
    // Predicated region
    $region10: #{tpu_custom_call.1} parent=1 // pred_check
      _
    $region11: #{tpu_custom_call.1} parent=1 // pred_check_branch
      %16 = sbr.rel (0) target = $region13
    $region12: #{tpu_custom_call.1} parent=1 // pred_region
      _
    $region13: #{tpu_custom_call.1} parent=1 // pred_fallthru
      _
    // Predicated region
    $region14: #{tpu_custom_call.1} parent=1 // pred_check
      _
    $region15: #{tpu_custom_call.1} parent=1 // pred_check_branch
      %18 = sbr.rel (0) target = $region17
    $region16: #{tpu_custom_call.1} parent=1 // pred_region
      _
    $region17: #{tpu_custom_call.1} parent=1 // pred_fallthru
      _
    // Predicated region
    $region18: #{tpu_custom_call.1} parent=1 // pred_check
      _
    $region19: #{tpu_custom_call.1} parent=1 // pred_check_branch
      %20 = sbr.rel (0) target = $region21
    $region20: #{tpu_custom_call.1} parent=1 // pred_region
      _
    $region21: #{tpu_custom_call.1} parent=1 // pred_fallthru
      _
    %v22 = vld [vmem:[%s0] sm:$0xff]
    %v23 = vld [vmem:[%s0 + $0x8] sm:$0xff]
    %v24 = vld [vmem:[%s0 + $0x10] sm:$0xff]
    %v25 = vld [vmem:[%s0 + $0x18] sm:$0xff]
    %v26 = vld [vmem:[%s0 + $0x20] sm:$0xff]
    %v27 = vld [vmem:[%s0 + $0x28] sm:$0xff]
    %v28 = vld [vmem:[%s0 + $0x30] sm:$0xff]
    %v29 = vld [vmem:[%s0 + $0x38] sm:$0xff]
    %v30 = vld [vmem:[%s0 + $0x40] sm:$0xff]
    %v31 = vld [vmem:[%s0 + $0x48] sm:$0xff]
    %v32 = vld [vmem:[%s0 + $0x50] sm:$0xff]
    %v33 = vld [vmem:[%s0 + $0x58] sm:$0xff]
    %v34 = vld [vmem:[%s0 + $0x60] sm:$0xff]
    %v35 = vld [vmem:[%s0 + $0x68] sm:$0xff]
    %v36 = vld [vmem:[%s0 + $0x70] sm:$0xff]
    %v37 = vld [vmem:[%s0 + $0x78] sm:$0xff]
    %v38 = vld [vmem:[%s0 + $0x80] sm:$0xff]
    %v39 = vld [vmem:[%s0 + $0x88] sm:$0xff]
    %v40 = vld [vmem:[%s0 + $0x90] sm:$0xff]
    %v41 = vld [vmem:[%s0 + $0x98] sm:$0xff]
    %v42 = vld [vmem:[%s0 + $0xa0] sm:$0xff]
    %v43 = vld [vmem:[%s0 + $0xa8] sm:$0xff]
    %v44 = vld [vmem:[%s0 + $0xb0] sm:$0xff]
    %v45 = vld [vmem:[%s0 + $0xb8] sm:$0xff]
    %v46 = vld [vmem:[%s0 + $0xc0] sm:$0xff]
    %v47 = vld [vmem:[%s0 + $0xc8] sm:$0xff]
    %v48 = vld [vmem:[%s0 + $0xd0] sm:$0xff]
    %v49 = vld [vmem:[%s0 + $0xd8] sm:$0xff]
    %v50 = vld [vmem:[%s0 + $0xe0] sm:$0xff]
    %v51 = vld [vmem:[%s0 + $0xe8] sm:$0xff]
    %v52 = vld [vmem:[%s0 + $0xf0] sm:$0xff]
    %v53 = vld [vmem:[%s0 + $0xf8] sm:$0xff]
    %v54 = vpack.c.bf16 %v23, %v22
    %v55 = vpack.c.bf16 %v25, %v24
    %v56 = vpack.c.bf16 %v27, %v26
    %v57 = vpack.c.bf16 %v29, %v28
    %v58 = vpack.c.bf16 %v31, %v30
    %v59 = vpack.c.bf16 %v33, %v32
    %v60 = vpack.c.bf16 %v35, %v34
    %v61 = vpack.c.bf16 %v37, %v36
    %v62 = vpack.c.bf16 %v39, %v38
    %v63 = vpack.c.bf16 %v41, %v40
    %v64 = vpack.c.bf16 %v43, %v42
    %v65 = vpack.c.bf16 %v45, %v44
    %v66 = vpack.c.bf16 %v47, %v46
    %v67 = vpack.c.bf16 %v49, %v48
    %v68 = vpack.c.bf16 %v51, %v50
    %v69 = vpack.c.bf16 %v53, %v52
    %v70 = vld [vmem:[%s1] sm:$0xf]
    %v71 = vld [vmem:[%s1 + $0x4] sm:$0xf]
    %v72 = vld [vmem:[%s1 + $0x8] sm:$0xf]
    %v73 = vld [vmem:[%s1 + $0xc] sm:$0xf]
    %v74 = vld [vmem:[%s1 + $0x10] sm:$0xf]
    %v75 = vld [vmem:[%s1 + $0x14] sm:$0xf]
    %v76 = vld [vmem:[%s1 + $0x18] sm:$0xf]
    %v77 = vld [vmem:[%s1 + $0x1c] sm:$0xf]
    %v78 = vld [vmem:[%s2] sm:$0x1]
    %v80 = vlaneseq
    %v81 = vshrl.u32 %v80, 7
    %v82 = vsub.s32 0, %v81
    %v83 = vrot.slane %v78, %v82
    %v93 = vunpack.c.l.b16 %v70
    %v94 = vunpack.c.l.b16 %v71
    %v95 = vunpack.c.l.b16 %v72
    %v96 = vunpack.c.l.b16 %v73
    %v97 = vunpack.c.l.b16 %v74
    %v98 = vunpack.c.l.b16 %v75
    %v99 = vunpack.c.l.b16 %v76
    %v100 = vunpack.c.l.b16 %v77
    %v101 = vpack.c.b16 %v94, %v93
    %v102 = vpack.c.b16 %v96, %v95
    %v103 = vpack.c.b16 %v98, %v97
    %v104 = vpack.c.b16 %v100, %v99
    %vm109 = vcmask 523264
    %v111 = vsel %vm109, %v54, 0
    %v114 = vsel %vm109, %v55, 0
    %v117 = vsel %vm109, %v56, 0
    %v120 = vsel %vm109, %v57, 0
    %v123 = vsel %vm109, %v58, 0
    %v126 = vsel %vm109, %v59, 0
    %v129 = vsel %vm109, %v60, 0
    %v132 = vsel %vm109, %v61, 0
    %v135 = vsel %vm109, %v62, 0
    %v138 = vsel %vm109, %v63, 0
    %v141 = vsel %vm109, %v64, 0
    %v144 = vsel %vm109, %v65, 0
    %v147 = vsel %vm109, %v66, 0
    %v150 = vsel %vm109, %v67, 0
    %v153 = vsel %vm109, %v68, 0
    %v156 = vsel %vm109, %v69, 0
    %158 = vmatprep.subr.bf16.mxu0 0
    %159 = vmatpush1.bf16.msra.mxu0 0
    %160 = vmatprep.subr.bf16.mxu0 0
    %161 = vmatpush1.bf16.msra.mxu0 0
    %162 = vmatprep.subr.bf16.mxu0 0
    %163 = vmatpush1.bf16.msra.mxu0 0
    %164 = vmatprep.subr.bf16.mxu0 0
    %165 = vmatpush1.bf16.msra.mxu0 0
    %166 = vmatprep.subr.bf16.mxu0 0
    %167 = vmatpush1.bf16.msra.mxu0 %v104
    %168 = vmatprep.subr.bf16.mxu0 0
    %169 = vmatpush1.bf16.msra.mxu0 %v103
    %170 = vmatprep.subr.bf16.mxu0 0
    %171 = vmatpush1.bf16.msra.mxu0 %v102
    %172 = vmatprep.subr.bf16.mxu0 0
    %173 = vmatpush1.bf16.msra.mxu0 %v101
    %174 = vmatprep.subr.bf16.mxu0 0
    %175 = vmatpush2.bf16.msra.mxu0 0
    %176 = vmatprep.subr.bf16.mxu0 0
    %177 = vmatpush2.bf16.msra.mxu0 0
    %178 = vmatprep.subr.bf16.mxu0 0
    %179 = vmatpush2.bf16.msra.mxu0 0
    %180 = vmatprep.subr.bf16.mxu0 0
    %181 = vmatpush2.bf16.msra.mxu0 0
    %182 = vmatprep.subr.bf16.mxu0 0
    %183 = vmatpush2.bf16.msra.mxu0 0
    %184 = vmatprep.subr.bf16.mxu0 0
    %185 = vmatpush2.bf16.msra.mxu0 0
    %186 = vmatprep.subr.bf16.mxu0 0
    %187 = vmatpush2.bf16.msra.mxu0 0
    %188 = vmatprep.subr.bf16.mxu0 0
    %189 = vmatpush2.bf16.msra.mxu0 0
    %190 = vmatprep.mubr.bf16.mxu0 0
    %191 = vmatmul.mubr.bf16.gmra.mxu0 %v111
    %v192 = vpop.f32.mrf.mxu0
    %v193 = vadd.f32 %v83, %v192
    %v194 = vpop.f32.mrf.mxu0
    %v195 = vpop.f32.mrf.mxu0
    %v196 = vadd.f32 %v83, %v195
    %v197 = vpop.f32.mrf.mxu0
    %198 = vmatprep.mubr.bf16.mxu0 0
    %199 = vmatmul.mubr.bf16.gmra.mxu0 %v114
    %v200 = vpop.f32.mrf.mxu0
    %v201 = vadd.f32 %v83, %v200
    %v202 = vpop.f32.mrf.mxu0
    %v203 = vpop.f32.mrf.mxu0
    %v204 = vadd.f32 %v83, %v203
    %v205 = vpop.f32.mrf.mxu0
    %206 = vmatprep.mubr.bf16.mxu0 0
    %207 = vmatmul.mubr.bf16.gmra.mxu0 %v117
    %v208 = vpop.f32.mrf.mxu0
    %v209 = vadd.f32 %v83, %v208
    %v210 = vpop.f32.mrf.mxu0
    %v211 = vpop.f32.mrf.mxu0
    %v212 = vadd.f32 %v83, %v211
    %v213 = vpop.f32.mrf.mxu0
    %214 = vmatprep.mubr.bf16.mxu0 0
    %215 = vmatmul.mubr.bf16.gmra.mxu0 %v120
    %v216 = vpop.f32.mrf.mxu0
    %v217 = vadd.f32 %v83, %v216
    %v218 = vpop.f32.mrf.mxu0
    %v219 = vpop.f32.mrf.mxu0
    %v220 = vadd.f32 %v83, %v219
    %v221 = vpop.f32.mrf.mxu0
    %222 = vmatprep.mubr.bf16.mxu0 0
    %223 = vmatmul.mubr.bf16.gmra.mxu0 %v123
    %v224 = vpop.f32.mrf.mxu0
    %v225 = vadd.f32 %v83, %v224
    %v226 = vpop.f32.mrf.mxu0
    %v227 = vpop.f32.mrf.mxu0
    %v228 = vadd.f32 %v83, %v227
    %v229 = vpop.f32.mrf.mxu0
    %230 = vmatprep.mubr.bf16.mxu0 0
    %231 = vmatmul.mubr.bf16.gmra.mxu0 %v126
    %v232 = vpop.f32.mrf.mxu0
    %v233 = vadd.f32 %v83, %v232
    %v234 = vpop.f32.mrf.mxu0
    %v235 = vpop.f32.mrf.mxu0
    %v236 = vadd.f32 %v83, %v235
    %v237 = vpop.f32.mrf.mxu0
    %238 = vmatprep.mubr.bf16.mxu0 0
    %239 = vmatmul.mubr.bf16.gmra.mxu0 %v129
    %v240 = vpop.f32.mrf.mxu0
    %v241 = vadd.f32 %v83, %v240
    %v242 = vpop.f32.mrf.mxu0
    %v243 = vpop.f32.mrf.mxu0
    %v244 = vadd.f32 %v83, %v243
    %v245 = vpop.f32.mrf.mxu0
    %246 = vmatprep.mubr.bf16.mxu0 0
    %247 = vmatmul.mubr.bf16.gmra.mxu0 %v132
    %v248 = vpop.f32.mrf.mxu0
    %v249 = vadd.f32 %v83, %v248
    %v250 = vpop.f32.mrf.mxu0
    %v251 = vpop.f32.mrf.mxu0
    %v252 = vadd.f32 %v83, %v251
    %v253 = vpop.f32.mrf.mxu0
    %254 = vmatprep.mubr.bf16.mxu0 0
    %255 = vmatmul.mubr.bf16.gmra.mxu0 %v135
    %v256 = vpop.f32.mrf.mxu0
    %v257 = vadd.f32 %v83, %v256
    %v258 = vpop.f32.mrf.mxu0
    %v259 = vpop.f32.mrf.mxu0
    %v260 = vadd.f32 %v83, %v259
    %v261 = vpop.f32.mrf.mxu0
    %262 = vmatprep.mubr.bf16.mxu0 0
    %263 = vmatmul.mubr.bf16.gmra.mxu0 %v138
    %v264 = vpop.f32.mrf.mxu0
    %v265 = vadd.f32 %v83, %v264
    %v266 = vpop.f32.mrf.mxu0
    %v267 = vpop.f32.mrf.mxu0
    %v268 = vadd.f32 %v83, %v267
    %v269 = vpop.f32.mrf.mxu0
    %270 = vmatprep.mubr.bf16.mxu0 0
    %271 = vmatmul.mubr.bf16.gmra.mxu0 %v141
    %v272 = vpop.f32.mrf.mxu0
    %v273 = vadd.f32 %v83, %v272
    %v274 = vpop.f32.mrf.mxu0
    %v275 = vpop.f32.mrf.mxu0
    %v276 = vadd.f32 %v83, %v275
    %v277 = vpop.f32.mrf.mxu0
    %278 = vmatprep.mubr.bf16.mxu0 0
    %279 = vmatmul.mubr.bf16.gmra.mxu0 %v144
    %v280 = vpop.f32.mrf.mxu0
    %v281 = vadd.f32 %v83, %v280
    %v282 = vpop.f32.mrf.mxu0
    %v283 = vpop.f32.mrf.mxu0
    %v284 = vadd.f32 %v83, %v283
    %v285 = vpop.f32.mrf.mxu0
    %286 = vmatprep.mubr.bf16.mxu0 0
    %287 = vmatmul.mubr.bf16.gmra.mxu0 %v147
    %v288 = vpop.f32.mrf.mxu0
    %v289 = vadd.f32 %v83, %v288
    %v290 = vpop.f32.mrf.mxu0
    %v291 = vpop.f32.mrf.mxu0
    %v292 = vadd.f32 %v83, %v291
    %v293 = vpop.f32.mrf.mxu0
    %294 = vmatprep.mubr.bf16.mxu0 0
    %295 = vmatmul.mubr.bf16.gmra.mxu0 %v150
    %v296 = vpop.f32.mrf.mxu0
    %v297 = vadd.f32 %v83, %v296
    %v298 = vpop.f32.mrf.mxu0
    %v299 = vpop.f32.mrf.mxu0
    %v300 = vadd.f32 %v83, %v299
    %v301 = vpop.f32.mrf.mxu0
    %302 = vmatprep.mubr.bf16.mxu0 0
    %303 = vmatmul.mubr.bf16.gmra.mxu0 %v153
    %v304 = vpop.f32.mrf.mxu0
    %v305 = vadd.f32 %v83, %v304
    %v306 = vpop.f32.mrf.mxu0
    %v307 = vpop.f32.mrf.mxu0
    %v308 = vadd.f32 %v83, %v307
    %v309 = vpop.f32.mrf.mxu0
    %310 = vmatprep.mubr.bf16.mxu0 0
    %311 = vmatmul.mubr.bf16.gmra.mxu0 %v156
    %v312 = vpop.f32.mrf.mxu0
    %v313 = vadd.f32 %v83, %v312
    %v314 = vpop.f32.mrf.mxu0
    %v315 = vpop.f32.mrf.mxu0
    %v316 = vadd.f32 %v83, %v315
    %v317 = vpop.f32.mrf.mxu0
    %318 = vdwg.mxu0
    %v319 = vmax.f32 %v193, 0.0
    %v320 = vmax.f32 %v196, 0.0
    %v321 = vmax.f32 %v201, 0.0
    %v322 = vmax.f32 %v204, 0.0
    %v323 = vmax.f32 %v209, 0.0
    %v324 = vmax.f32 %v212, 0.0
    %v325 = vmax.f32 %v217, 0.0
    %v326 = vmax.f32 %v220, 0.0
    %v327 = vmax.f32 %v225, 0.0
    %v328 = vmax.f32 %v228, 0.0
    %v329 = vmax.f32 %v233, 0.0
    %v330 = vmax.f32 %v236, 0.0
    %v331 = vmax.f32 %v241, 0.0
    %v332 = vmax.f32 %v244, 0.0
    %v333 = vmax.f32 %v249, 0.0
    %v334 = vmax.f32 %v252, 0.0
    %v335 = vmax.f32 %v257, 0.0
    %v336 = vmax.f32 %v260, 0.0
    %v337 = vmax.f32 %v265, 0.0
    %v338 = vmax.f32 %v268, 0.0
    %v339 = vmax.f32 %v273, 0.0
    %v340 = vmax.f32 %v276, 0.0
    %v341 = vmax.f32 %v281, 0.0
    %v342 = vmax.f32 %v284, 0.0
    %v343 = vmax.f32 %v289, 0.0
    %v344 = vmax.f32 %v292, 0.0
    %v345 = vmax.f32 %v297, 0.0
    %v346 = vmax.f32 %v300, 0.0
    %v347 = vmax.f32 %v305, 0.0
    %v348 = vmax.f32 %v308, 0.0
    %v349 = vmax.f32 %v313, 0.0
    %v350 = vmax.f32 %v316, 0.0
    %v351 = vpack.c.bf16 %v320, %v319
    %v352 = vpack.c.bf16 %v322, %v321
    %v353 = vpack.c.bf16 %v324, %v323
    %v354 = vpack.c.bf16 %v326, %v325
    %v355 = vpack.c.bf16 %v328, %v327
    %v356 = vpack.c.bf16 %v330, %v329
    %v357 = vpack.c.bf16 %v332, %v331
    %v358 = vpack.c.bf16 %v334, %v333
    %v359 = vpack.c.bf16 %v336, %v335
    %v360 = vpack.c.bf16 %v338, %v337
    %v361 = vpack.c.bf16 %v340, %v339
    %v362 = vpack.c.bf16 %v342, %v341
    %v363 = vpack.c.bf16 %v344, %v343
    %v364 = vpack.c.bf16 %v346, %v345
    %v365 = vpack.c.bf16 %v348, %v347
    %v366 = vpack.c.bf16 %v350, %v349
    %v367 = vld [vmem:[%s3] sm:$0xf]
    %v368 = vld [vmem:[%s3 + $0x4] sm:$0xf]
    %v369 = vld [vmem:[%s3 + $0x8] sm:$0xf]
    %v370 = vld [vmem:[%s3 + $0xc] sm:$0xf]
    %v371 = vld [vmem:[%s3 + $0x10] sm:$0xf]
    %v372 = vld [vmem:[%s3 + $0x14] sm:$0xf]
    %v373 = vld [vmem:[%s3 + $0x18] sm:$0xf]
    %v374 = vld [vmem:[%s3 + $0x1c] sm:$0xf]
    %v375 = vld [vmem:[%s3 + $0x20] sm:$0xf]
    %v376 = vld [vmem:[%s3 + $0x24] sm:$0xf]
    %v377 = vld [vmem:[%s3 + $0x28] sm:$0xf]
    %v378 = vld [vmem:[%s3 + $0x2c] sm:$0xf]
    %v379 = vld [vmem:[%s3 + $0x30] sm:$0xf]
    %v380 = vld [vmem:[%s3 + $0x34] sm:$0xf]
    %v381 = vld [vmem:[%s3 + $0x38] sm:$0xf]
    %v382 = vld [vmem:[%s3 + $0x3c] sm:$0xf]
    %v383 = vld [vmem:[%s4] sm:$0x1]
    %v385 = vlaneseq
    %v386 = vshrl.u32 %v385, 7
    %v387 = vsub.s32 0, %v386
    %v388 = vrot.slane %v383, %v387
    %v406 = vunpack.c.l.b16 %v367
    %v407 = vunpack.c.l.b16 %v368
    %v408 = vunpack.c.l.b16 %v369
    %v409 = vunpack.c.l.b16 %v370
    %v410 = vunpack.c.l.b16 %v371
    %v411 = vunpack.c.l.b16 %v372
    %v412 = vunpack.c.l.b16 %v373
    %v413 = vunpack.c.l.b16 %v374
    %v414 = vunpack.c.l.b16 %v375
    %v415 = vunpack.c.l.b16 %v376
    %v416 = vunpack.c.l.b16 %v377
    %v417 = vunpack.c.l.b16 %v378
    %v418 = vunpack.c.l.b16 %v379
    %v419 = vunpack.c.l.b16 %v380
    %v420 = vunpack.c.l.b16 %v381
    %v421 = vunpack.c.l.b16 %v382
    %v422 = vpack.c.b16 %v407, %v406
    %v423 = vpack.c.b16 %v409, %v408
    %v424 = vpack.c.b16 %v411, %v410
    %v425 = vpack.c.b16 %v413, %v412
    %v426 = vpack.c.b16 %v415, %v414
    %v427 = vpack.c.b16 %v417, %v416
    %v428 = vpack.c.b16 %v419, %v418
    %v429 = vpack.c.b16 %v421, %v420
    %438 = vmatprep.subr.bf16.mxu0 0
    %439 = vmatpush1.bf16.msra.mxu0 %v429
    %440 = vmatprep.subr.bf16.mxu0 0
    %441 = vmatpush1.bf16.msra.mxu0 %v428
    %442 = vmatprep.subr.bf16.mxu0 0
    %443 = vmatpush1.bf16.msra.mxu0 %v427
    %444 = vmatprep.subr.bf16.mxu0 0
    %445 = vmatpush1.bf16.msra.mxu0 %v426
    %446 = vmatprep.subr.bf16.mxu0 0
    %447 = vmatpush1.bf16.msra.mxu0 %v425
    %448 = vmatprep.subr.bf16.mxu0 0
    %449 = vmatpush1.bf16.msra.mxu0 %v424
    %450 = vmatprep.subr.bf16.mxu0 0
    %451 = vmatpush1.bf16.msra.mxu0 %v423
    %452 = vmatprep.subr.bf16.mxu0 0
    %453 = vmatpush1.bf16.msra.mxu0 %v422
    %454 = vmatprep.subr.bf16.mxu0 0
    %455 = vmatpush2.bf16.msra.mxu0 0
    %456 = vmatprep.subr.bf16.mxu0 0
    %457 = vmatpush2.bf16.msra.mxu0 0
    %458 = vmatprep.subr.bf16.mxu0 0
    %459 = vmatpush2.bf16.msra.mxu0 0
    %460 = vmatprep.subr.bf16.mxu0 0
    %461 = vmatpush2.bf16.msra.mxu0 0
    %462 = vmatprep.subr.bf16.mxu0 0
    %463 = vmatpush2.bf16.msra.mxu0 0
    %464 = vmatprep.subr.bf16.mxu0 0
    %465 = vmatpush2.bf16.msra.mxu0 0
    %466 = vmatprep.subr.bf16.mxu0 0
    %467 = vmatpush2.bf16.msra.mxu0 0
    %468 = vmatprep.subr.bf16.mxu0 0
    %469 = vmatpush2.bf16.msra.mxu0 0
    %470 = vmatprep.mubr.bf16.mxu0 0
    %471 = vmatmul.mubr.bf16.gmra.mxu0 %v351
    %v472 = vpop.f32.mrf.mxu0
    %v473 = vadd.f32 %v388, %v472
    %v474 = vpop.f32.mrf.mxu0
    %v475 = vpop.f32.mrf.mxu0
    %v476 = vadd.f32 %v388, %v475
    %v477 = vpop.f32.mrf.mxu0
    %478 = vmatprep.mubr.bf16.mxu0 0
    %479 = vmatmul.mubr.bf16.gmra.mxu0 %v352
    %v480 = vpop.f32.mrf.mxu0
    %v481 = vadd.f32 %v388, %v480
    %v482 = vpop.f32.mrf.mxu0
    %v483 = vpop.f32.mrf.mxu0
    %v484 = vadd.f32 %v388, %v483
    %v485 = vpop.f32.mrf.mxu0
    %486 = vmatprep.mubr.bf16.mxu0 0
    %487 = vmatmul.mubr.bf16.gmra.mxu0 %v353
    %v488 = vpop.f32.mrf.mxu0
    %v489 = vadd.f32 %v388, %v488
    %v490 = vpop.f32.mrf.mxu0
    %v491 = vpop.f32.mrf.mxu0
    %v492 = vadd.f32 %v388, %v491
    %v493 = vpop.f32.mrf.mxu0
    %494 = vmatprep.mubr.bf16.mxu0 0
    %495 = vmatmul.mubr.bf16.gmra.mxu0 %v354
    %v496 = vpop.f32.mrf.mxu0
    %v497 = vadd.f32 %v388, %v496
    %v498 = vpop.f32.mrf.mxu0
    %v499 = vpop.f32.mrf.mxu0
    %v500 = vadd.f32 %v388, %v499
    %v501 = vpop.f32.mrf.mxu0
    %502 = vmatprep.mubr.bf16.mxu0 0
    %503 = vmatmul.mubr.bf16.gmra.mxu0 %v355
    %v504 = vpop.f32.mrf.mxu0
    %v505 = vadd.f32 %v388, %v504
    %v506 = vpop.f32.mrf.mxu0
    %v507 = vpop.f32.mrf.mxu0
    %v508 = vadd.f32 %v388, %v507
    %v509 = vpop.f32.mrf.mxu0
    %510 = vmatprep.mubr.bf16.mxu0 0
    %511 = vmatmul.mubr.bf16.gmra.mxu0 %v356
    %v512 = vpop.f32.mrf.mxu0
    %v513 = vadd.f32 %v388, %v512
    %v514 = vpop.f32.mrf.mxu0
    %v515 = vpop.f32.mrf.mxu0
    %v516 = vadd.f32 %v388, %v515
    %v517 = vpop.f32.mrf.mxu0
    %518 = vmatprep.mubr.bf16.mxu0 0
    %519 = vmatmul.mubr.bf16.gmra.mxu0 %v357
    %v520 = vpop.f32.mrf.mxu0
    %v521 = vadd.f32 %v388, %v520
    %v522 = vpop.f32.mrf.mxu0
    %v523 = vpop.f32.mrf.mxu0
    %v524 = vadd.f32 %v388, %v523
    %v525 = vpop.f32.mrf.mxu0
    %526 = vmatprep.mubr.bf16.mxu0 0
    %527 = vmatmul.mubr.bf16.gmra.mxu0 %v358
    %v528 = vpop.f32.mrf.mxu0
    %v529 = vadd.f32 %v388, %v528
    %v530 = vpop.f32.mrf.mxu0
    %v531 = vpop.f32.mrf.mxu0
    %v532 = vadd.f32 %v388, %v531
    %v533 = vpop.f32.mrf.mxu0
    %534 = vmatprep.mubr.bf16.mxu0 0
    %535 = vmatmul.mubr.bf16.gmra.mxu0 %v359
    %v536 = vpop.f32.mrf.mxu0
    %v537 = vadd.f32 %v388, %v536
    %v538 = vpop.f32.mrf.mxu0
    %v539 = vpop.f32.mrf.mxu0
    %v540 = vadd.f32 %v388, %v539
    %v541 = vpop.f32.mrf.mxu0
    %542 = vmatprep.mubr.bf16.mxu0 0
    %543 = vmatmul.mubr.bf16.gmra.mxu0 %v360
    %v544 = vpop.f32.mrf.mxu0
    %v545 = vadd.f32 %v388, %v544
    %v546 = vpop.f32.mrf.mxu0
    %v547 = vpop.f32.mrf.mxu0
    %v548 = vadd.f32 %v388, %v547
    %v549 = vpop.f32.mrf.mxu0
    %550 = vmatprep.mubr.bf16.mxu0 0
    %551 = vmatmul.mubr.bf16.gmra.mxu0 %v361
    %v552 = vpop.f32.mrf.mxu0
    %v553 = vadd.f32 %v388, %v552
    %v554 = vpop.f32.mrf.mxu0
    %v555 = vpop.f32.mrf.mxu0
    %v556 = vadd.f32 %v388, %v555
    %v557 = vpop.f32.mrf.mxu0
    %558 = vmatprep.mubr.bf16.mxu0 0
    %559 = vmatmul.mubr.bf16.gmra.mxu0 %v362
    %v560 = vpop.f32.mrf.mxu0
    %v561 = vadd.f32 %v388, %v560
    %v562 = vpop.f32.mrf.mxu0
    %v563 = vpop.f32.mrf.mxu0
    %v564 = vadd.f32 %v388, %v563
    %v565 = vpop.f32.mrf.mxu0
    %566 = vmatprep.mubr.bf16.mxu0 0
    %567 = vmatmul.mubr.bf16.gmra.mxu0 %v363
    %v568 = vpop.f32.mrf.mxu0
    %v569 = vadd.f32 %v388, %v568
    %v570 = vpop.f32.mrf.mxu0
    %v571 = vpop.f32.mrf.mxu0
    %v572 = vadd.f32 %v388, %v571
    %v573 = vpop.f32.mrf.mxu0
    %574 = vmatprep.mubr.bf16.mxu0 0
    %575 = vmatmul.mubr.bf16.gmra.mxu0 %v364
    %v576 = vpop.f32.mrf.mxu0
    %v577 = vadd.f32 %v388, %v576
    %v578 = vpop.f32.mrf.mxu0
    %v579 = vpop.f32.mrf.mxu0
    %v580 = vadd.f32 %v388, %v579
    %v581 = vpop.f32.mrf.mxu0
    %582 = vmatprep.mubr.bf16.mxu0 0
    %583 = vmatmul.mubr.bf16.gmra.mxu0 %v365
    %v584 = vpop.f32.mrf.mxu0
    %v585 = vadd.f32 %v388, %v584
    %v586 = vpop.f32.mrf.mxu0
    %v587 = vpop.f32.mrf.mxu0
    %v588 = vadd.f32 %v388, %v587
    %v589 = vpop.f32.mrf.mxu0
    %590 = vmatprep.mubr.bf16.mxu0 0
    %591 = vmatmul.mubr.bf16.gmra.mxu0 %v366
    %v592 = vpop.f32.mrf.mxu0
    %v593 = vadd.f32 %v388, %v592
    %v594 = vpop.f32.mrf.mxu0
    %v595 = vpop.f32.mrf.mxu0
    %v596 = vadd.f32 %v388, %v595
    %v597 = vpop.f32.mrf.mxu0
    %598 = vdwg.mxu0
    %599 = vmax.xlane.f32.xlu0 %v473
    %v600 = vpop.xlane.xlu0 %599
    %601 = vmax.xlane.f32.xlu0 %v476
    %v602 = vpop.xlane.xlu0 %601
    %603 = vmax.xlane.f32.xlu0 %v481
    %v604 = vpop.xlane.xlu0 %603
    %605 = vmax.xlane.f32.xlu0 %v484
    %v606 = vpop.xlane.xlu0 %605
    %607 = vmax.xlane.f32.xlu0 %v489
    %v608 = vpop.xlane.xlu0 %607
    %609 = vmax.xlane.f32.xlu0 %v492
    %v610 = vpop.xlane.xlu0 %609
    %611 = vmax.xlane.f32.xlu0 %v497
    %v612 = vpop.xlane.xlu0 %611
    %613 = vmax.xlane.f32.xlu0 %v500
    %v614 = vpop.xlane.xlu0 %613
    %615 = vmax.xlane.f32.xlu0 %v505
    %v616 = vpop.xlane.xlu0 %615
    %617 = vmax.xlane.f32.xlu0 %v508
    %v618 = vpop.xlane.xlu0 %617
    %619 = vmax.xlane.f32.xlu0 %v513
    %v620 = vpop.xlane.xlu0 %619
    %621 = vmax.xlane.f32.xlu0 %v516
    %v622 = vpop.xlane.xlu0 %621
    %623 = vmax.xlane.f32.xlu0 %v521
    %v624 = vpop.xlane.xlu0 %623
    %625 = vmax.xlane.f32.xlu0 %v524
    %v626 = vpop.xlane.xlu0 %625
    %627 = vmax.xlane.f32.xlu0 %v529
    %v628 = vpop.xlane.xlu0 %627
    %629 = vmax.xlane.f32.xlu0 %v532
    %v630 = vpop.xlane.xlu0 %629
    %631 = vmax.xlane.f32.xlu0 %v537
    %v632 = vpop.xlane.xlu0 %631
    %633 = vmax.xlane.f32.xlu0 %v540
    %v634 = vpop.xlane.xlu0 %633
    %635 = vmax.xlane.f32.xlu0 %v545
    %v636 = vpop.xlane.xlu0 %635
    %637 = vmax.xlane.f32.xlu0 %v548
    %v638 = vpop.xlane.xlu0 %637
    %639 = vmax.xlane.f32.xlu0 %v553
    %v640 = vpop.xlane.xlu0 %639
    %641 = vmax.xlane.f32.xlu0 %v556
    %v642 = vpop.xlane.xlu0 %641
    %643 = vmax.xlane.f32.xlu0 %v561
    %v644 = vpop.xlane.xlu0 %643
    %645 = vmax.xlane.f32.xlu0 %v564
    %v646 = vpop.xlane.xlu0 %645
    %647 = vmax.xlane.f32.xlu0 %v569
    %v648 = vpop.xlane.xlu0 %647
    %649 = vmax.xlane.f32.xlu0 %v572
    %v650 = vpop.xlane.xlu0 %649
    %651 = vmax.xlane.f32.xlu0 %v577
    %v652 = vpop.xlane.xlu0 %651
    %653 = vmax.xlane.f32.xlu0 %v580
    %v654 = vpop.xlane.xlu0 %653
    %655 = vmax.xlane.f32.xlu0 %v585
    %v656 = vpop.xlane.xlu0 %655
    %657 = vmax.xlane.f32.xlu0 %v588
    %v658 = vpop.xlane.xlu0 %657
    %659 = vmax.xlane.f32.xlu0 %v593
    %v660 = vpop.xlane.xlu0 %659
    %661 = vmax.xlane.f32.xlu0 %v596
    %v662 = vpop.xlane.xlu0 %661
    %v663 = vsub.f32 %v473, %v600
    %v664 = vsub.f32 %v476, %v602
    %v665 = vsub.f32 %v481, %v604
    %v666 = vsub.f32 %v484, %v606
    %v667 = vsub.f32 %v489, %v608
    %v668 = vsub.f32 %v492, %v610
    %v669 = vsub.f32 %v497, %v612
    %v670 = vsub.f32 %v500, %v614
    %v671 = vsub.f32 %v505, %v616
    %v672 = vsub.f32 %v508, %v618
    %v673 = vsub.f32 %v513, %v620
    %v674 = vsub.f32 %v516, %v622
    %v675 = vsub.f32 %v521, %v624
    %v676 = vsub.f32 %v524, %v626
    %v677 = vsub.f32 %v529, %v628
    %v678 = vsub.f32 %v532, %v630
    %v679 = vsub.f32 %v537, %v632
    %v680 = vsub.f32 %v540, %v634
    %v681 = vsub.f32 %v545, %v636
    %v682 = vsub.f32 %v548, %v638
    %v683 = vsub.f32 %v553, %v640
    %v684 = vsub.f32 %v556, %v642
    %v685 = vsub.f32 %v561, %v644
    %v686 = vsub.f32 %v564, %v646
    %v687 = vsub.f32 %v569, %v648
    %v688 = vsub.f32 %v572, %v650
    %v689 = vsub.f32 %v577, %v652
    %v690 = vsub.f32 %v580, %v654
    %v691 = vsub.f32 %v585, %v656
    %v692 = vsub.f32 %v588, %v658
    %v693 = vsub.f32 %v593, %v660
    %v694 = vsub.f32 %v596, %v662
    %v695 = vmul.f32 %v663, 1.442695
    %v696 = vpow.pop %v695
    %v697 = vmul.f32 %v664, 1.442695
    %v698 = vpow.pop %v697
    %v699 = vmul.f32 %v665, 1.442695
    %v700 = vpow.pop %v699
    %v701 = vmul.f32 %v666, 1.442695
    %v702 = vpow.pop %v701
    %v703 = vmul.f32 %v667, 1.442695
    %v704 = vpow.pop %v703
    %v705 = vmul.f32 %v668, 1.442695
    %v706 = vpow.pop %v705
    %v707 = vmul.f32 %v669, 1.442695
    %v708 = vpow.pop %v707
    %v709 = vmul.f32 %v670, 1.442695
    %v710 = vpow.pop %v709
    %v711 = vmul.f32 %v671, 1.442695
    %v712 = vpow.pop %v711
    %v713 = vmul.f32 %v672, 1.442695
    %v714 = vpow.pop %v713
    %v715 = vmul.f32 %v673, 1.442695
    %v716 = vpow.pop %v715
    %v717 = vmul.f32 %v674, 1.442695
    %v718 = vpow.pop %v717
    %v719 = vmul.f32 %v675, 1.442695
    %v720 = vpow.pop %v719
    %v721 = vmul.f32 %v676, 1.442695
    %v722 = vpow.pop %v721
    %v723 = vmul.f32 %v677, 1.442695
    %v724 = vpow.pop %v723
    %v725 = vmul.f32 %v678, 1.442695
    %v726 = vpow.pop %v725
    %v727 = vmul.f32 %v679, 1.442695
    %v728 = vpow.pop %v727
    %v729 = vmul.f32 %v680, 1.442695
    %v730 = vpow.pop %v729
    %v731 = vmul.f32 %v681, 1.442695
    %v732 = vpow.pop %v731
    %v733 = vmul.f32 %v682, 1.442695
    %v734 = vpow.pop %v733
    %v735 = vmul.f32 %v683, 1.442695
    %v736 = vpow.pop %v735
    %v737 = vmul.f32 %v684, 1.442695
    %v738 = vpow.pop %v737
    %v739 = vmul.f32 %v685, 1.442695
    %v740 = vpow.pop %v739
    %v741 = vmul.f32 %v686, 1.442695
    %v742 = vpow.pop %v741
    %v743 = vmul.f32 %v687, 1.442695
    %v744 = vpow.pop %v743
    %v745 = vmul.f32 %v688, 1.442695
    %v746 = vpow.pop %v745
    %v747 = vmul.f32 %v689, 1.442695
    %v748 = vpow.pop %v747
    %v749 = vmul.f32 %v690, 1.442695
    %v750 = vpow.pop %v749
    %v751 = vmul.f32 %v691, 1.442695
    %v752 = vpow.pop %v751
    %v753 = vmul.f32 %v692, 1.442695
    %v754 = vpow.pop %v753
    %v755 = vmul.f32 %v693, 1.442695
    %v756 = vpow.pop %v755
    %v757 = vmul.f32 %v694, 1.442695
    %v758 = vpow.pop %v757
    %759 = vadd.xlane.f32.xlu0 %v696
    %v760 = vpop.xlane.xlu0 %759
    %761 = vadd.xlane.f32.xlu0 %v698
    %v762 = vpop.xlane.xlu0 %761
    %763 = vadd.xlane.f32.xlu0 %v700
    %v764 = vpop.xlane.xlu0 %763
    %765 = vadd.xlane.f32.xlu0 %v702
    %v766 = vpop.xlane.xlu0 %765
    %767 = vadd.xlane.f32.xlu0 %v704
    %v768 = vpop.xlane.xlu0 %767
    %769 = vadd.xlane.f32.xlu0 %v706
    %v770 = vpop.xlane.xlu0 %769
    %771 = vadd.xlane.f32.xlu0 %v708
    %v772 = vpop.xlane.xlu0 %771
    %773 = vadd.xlane.f32.xlu0 %v710
    %v774 = vpop.xlane.xlu0 %773
    %775 = vadd.xlane.f32.xlu0 %v712
    %v776 = vpop.xlane.xlu0 %775
    %777 = vadd.xlane.f32.xlu0 %v714
    %v778 = vpop.xlane.xlu0 %777
    %779 = vadd.xlane.f32.xlu0 %v716
    %v780 = vpop.xlane.xlu0 %779
    %781 = vadd.xlane.f32.xlu0 %v718
    %v782 = vpop.xlane.xlu0 %781
    %783 = vadd.xlane.f32.xlu0 %v720
    %v784 = vpop.xlane.xlu0 %783
    %785 = vadd.xlane.f32.xlu0 %v722
    %v786 = vpop.xlane.xlu0 %785
    %787 = vadd.xlane.f32.xlu0 %v724
    %v788 = vpop.xlane.xlu0 %787
    %789 = vadd.xlane.f32.xlu0 %v726
    %v790 = vpop.xlane.xlu0 %789
    %791 = vadd.xlane.f32.xlu0 %v728
    %v792 = vpop.xlane.xlu0 %791
    %793 = vadd.xlane.f32.xlu0 %v730
    %v794 = vpop.xlane.xlu0 %793
    %795 = vadd.xlane.f32.xlu0 %v732
    %v796 = vpop.xlane.xlu0 %795
    %797 = vadd.xlane.f32.xlu0 %v734
    %v798 = vpop.xlane.xlu0 %797
    %799 = vadd.xlane.f32.xlu0 %v736
    %v800 = vpop.xlane.xlu0 %799
    %801 = vadd.xlane.f32.xlu0 %v738
    %v802 = vpop.xlane.xlu0 %801
    %803 = vadd.xlane.f32.xlu0 %v740
    %v804 = vpop.xlane.xlu0 %803
    %805 = vadd.xlane.f32.xlu0 %v742
    %v806 = vpop.xlane.xlu0 %805
    %807 = vadd.xlane.f32.xlu0 %v744
    %v808 = vpop.xlane.xlu0 %807
    %809 = vadd.xlane.f32.xlu0 %v746
    %v810 = vpop.xlane.xlu0 %809
    %811 = vadd.xlane.f32.xlu0 %v748
    %v812 = vpop.xlane.xlu0 %811
    %813 = vadd.xlane.f32.xlu0 %v750
    %v814 = vpop.xlane.xlu0 %813
    %815 = vadd.xlane.f32.xlu0 %v752
    %v816 = vpop.xlane.xlu0 %815
    %817 = vadd.xlane.f32.xlu0 %v754
    %v818 = vpop.xlane.xlu0 %817
    %819 = vadd.xlane.f32.xlu0 %v756
    %v820 = vpop.xlane.xlu0 %819
    %821 = vadd.xlane.f32.xlu0 %v758
    %v822 = vpop.xlane.xlu0 %821
    %v823 = vrcp.pop %v760
    %v824 = vmul.f32 %v696, %v823
    %v825 = vrcp.pop %v762
    %v826 = vmul.f32 %v698, %v825
    %v827 = vrcp.pop %v764
    %v828 = vmul.f32 %v700, %v827
    %v829 = vrcp.pop %v766
    %v830 = vmul.f32 %v702, %v829
    %v831 = vrcp.pop %v768
    %v832 = vmul.f32 %v704, %v831
    %v833 = vrcp.pop %v770
    %v834 = vmul.f32 %v706, %v833
    %v835 = vrcp.pop %v772
    %v836 = vmul.f32 %v708, %v835
    %v837 = vrcp.pop %v774
    %v838 = vmul.f32 %v710, %v837
    %v839 = vrcp.pop %v776
    %v840 = vmul.f32 %v712, %v839
    %v841 = vrcp.pop %v778
    %v842 = vmul.f32 %v714, %v841
    %v843 = vrcp.pop %v780
    %v844 = vmul.f32 %v716, %v843
    %v845 = vrcp.pop %v782
    %v846 = vmul.f32 %v718, %v845
    %v847 = vrcp.pop %v784
    %v848 = vmul.f32 %v720, %v847
    %v849 = vrcp.pop %v786
    %v850 = vmul.f32 %v722, %v849
    %v851 = vrcp.pop %v788
    %v852 = vmul.f32 %v724, %v851
    %v853 = vrcp.pop %v790
    %v854 = vmul.f32 %v726, %v853
    %v855 = vrcp.pop %v792
    %v856 = vmul.f32 %v728, %v855
    %v857 = vrcp.pop %v794
    %v858 = vmul.f32 %v730, %v857
    %v859 = vrcp.pop %v796
    %v860 = vmul.f32 %v732, %v859
    %v861 = vrcp.pop %v798
    %v862 = vmul.f32 %v734, %v861
    %v863 = vrcp.pop %v800
    %v864 = vmul.f32 %v736, %v863
    %v865 = vrcp.pop %v802
    %v866 = vmul.f32 %v738, %v865
    %v867 = vrcp.pop %v804
    %v868 = vmul.f32 %v740, %v867
    %v869 = vrcp.pop %v806
    %v870 = vmul.f32 %v742, %v869
    %v871 = vrcp.pop %v808
    %v872 = vmul.f32 %v744, %v871
    %v873 = vrcp.pop %v810
    %v874 = vmul.f32 %v746, %v873
    %v875 = vrcp.pop %v812
    %v876 = vmul.f32 %v748, %v875
    %v877 = vrcp.pop %v814
    %v878 = vmul.f32 %v750, %v877
    %v879 = vrcp.pop %v816
    %v880 = vmul.f32 %v752, %v879
    %v881 = vrcp.pop %v818
    %v882 = vmul.f32 %v754, %v881
    %v883 = vrcp.pop %v820
    %v884 = vmul.f32 %v756, %v883
    %v885 = vrcp.pop %v822
    %v886 = vmul.f32 %v758, %v885
    %v887 = vpack.c.bf16 %v826, %v824
    %v888 = vpack.c.bf16 %v830, %v828
    %v889 = vpack.c.bf16 %v834, %v832
    %v890 = vpack.c.bf16 %v838, %v836
    %v891 = vpack.c.bf16 %v842, %v840
    %v892 = vpack.c.bf16 %v846, %v844
    %v893 = vpack.c.bf16 %v850, %v848
    %v894 = vpack.c.bf16 %v854, %v852
    %v895 = vpack.c.bf16 %v858, %v856
    %v896 = vpack.c.bf16 %v862, %v860
    %v897 = vpack.c.bf16 %v866, %v864
    %v898 = vpack.c.bf16 %v870, %v868
    %v899 = vpack.c.bf16 %v874, %v872
    %v900 = vpack.c.bf16 %v878, %v876
    %v901 = vpack.c.bf16 %v882, %v880
    %v902 = vpack.c.bf16 %v886, %v884
    %v919 = vunpack.c.l.b16 %v887
    %v920 = vunpack.c.h.b16 %v887
    %v921 = vunpack.c.l.b16 %v888
    %v922 = vunpack.c.h.b16 %v888
    %v923 = vunpack.c.l.b16 %v889
    %v924 = vunpack.c.h.b16 %v889
    %v925 = vunpack.c.l.b16 %v890
    %v926 = vunpack.c.h.b16 %v890
    %v927 = vunpack.c.l.b16 %v891
    %v928 = vunpack.c.h.b16 %v891
    %v929 = vunpack.c.l.b16 %v892
    %v930 = vunpack.c.h.b16 %v892
    %v931 = vunpack.c.l.b16 %v893
    %v932 = vunpack.c.h.b16 %v893
    %v933 = vunpack.c.l.b16 %v894
    %v934 = vunpack.c.h.b16 %v894
    %v935 = vunpack.c.l.b16 %v895
    %v936 = vunpack.c.h.b16 %v895
    %v937 = vunpack.c.l.b16 %v896
    %v938 = vunpack.c.h.b16 %v896
    %v939 = vunpack.c.l.b16 %v897
    %v940 = vunpack.c.h.b16 %v897
    %v941 = vunpack.c.l.b16 %v898
    %v942 = vunpack.c.h.b16 %v898
    %v943 = vunpack.c.l.b16 %v899
    %v944 = vunpack.c.h.b16 %v899
    %v945 = vunpack.c.l.b16 %v900
    %v946 = vunpack.c.h.b16 %v900
    %v947 = vunpack.c.l.b16 %v901
    %v948 = vunpack.c.h.b16 %v901
    %v949 = vunpack.c.l.b16 %v902
    %v950 = vunpack.c.h.b16 %v902
    %v951 = vpack.c.b16 %v919, %v919
    %v952 = vpack.c.b16 %v920, %v920
    %v953 = vpack.c.b16 %v921, %v921
    %v954 = vpack.c.b16 %v922, %v922
    %v955 = vpack.c.b16 %v923, %v923
    %v956 = vpack.c.b16 %v924, %v924
    %v957 = vpack.c.b16 %v925, %v925
    %v958 = vpack.c.b16 %v926, %v926
    %v959 = vpack.c.b16 %v927, %v927
    %v960 = vpack.c.b16 %v928, %v928
    %v961 = vpack.c.b16 %v929, %v929
    %v962 = vpack.c.b16 %v930, %v930
    %v963 = vpack.c.b16 %v931, %v931
    %v964 = vpack.c.b16 %v932, %v932
    %v965 = vpack.c.b16 %v933, %v933
    %v966 = vpack.c.b16 %v934, %v934
    %v967 = vpack.c.b16 %v935, %v935
    %v968 = vpack.c.b16 %v936, %v936
    %v969 = vpack.c.b16 %v937, %v937
    %v970 = vpack.c.b16 %v938, %v938
    %v971 = vpack.c.b16 %v939, %v939
    %v972 = vpack.c.b16 %v940, %v940
    %v973 = vpack.c.b16 %v941, %v941
    %v974 = vpack.c.b16 %v942, %v942
    %v975 = vpack.c.b16 %v943, %v943
    %v976 = vpack.c.b16 %v944, %v944
    %v977 = vpack.c.b16 %v945, %v945
    %v978 = vpack.c.b16 %v946, %v946
    %v979 = vpack.c.b16 %v947, %v947
    %v980 = vpack.c.b16 %v948, %v948
    %v981 = vpack.c.b16 %v949, %v949
    %v982 = vpack.c.b16 %v950, %v950
    %1015 = vst [vmem:[#allocation2] sm:$0xf] %v951
    %1016 = vst [vmem:[#allocation2 + $0x4] sm:$0xf] %v952
    %1017 = vst [vmem:[#allocation2 + $0x8] sm:$0xf] %v953
    %1018 = vst [vmem:[#allocation2 + $0xc] sm:$0xf] %v954
    %1019 = vst [vmem:[#allocation2 + $0x10] sm:$0xf] %v955
    %1020 = vst [vmem:[#allocation2 + $0x14] sm:$0xf] %v956
    %1021 = vst [vmem:[#allocation2 + $0x18] sm:$0xf] %v957
    %1022 = vst [vmem:[#allocation2 + $0x1c] sm:$0xf] %v958
    %1023 = vst [vmem:[#allocation2 + $0x20] sm:$0xf] %v959
    %1024 = vst [vmem:[#allocation2 + $0x24] sm:$0xf] %v960
    %1025 = vst [vmem:[#allocation2 + $0x28] sm:$0xf] %v961
    %1026 = vst [vmem:[#allocation2 + $0x2c] sm:$0xf] %v962
    %1027 = vst [vmem:[#allocation2 + $0x30] sm:$0xf] %v963
    %1028 = vst [vmem:[#allocation2 + $0x34] sm:$0xf] %v964
    %1029 = vst [vmem:[#allocation2 + $0x38] sm:$0xf] %v965
    %1030 = vst [vmem:[#allocation2 + $0x3c] sm:$0xf] %v966
    %1031 = vst [vmem:[#allocation2 + $0x40] sm:$0xf] %v967
    %1032 = vst [vmem:[#allocation2 + $0x44] sm:$0xf] %v968
    %1033 = vst [vmem:[#allocation2 + $0x48] sm:$0xf] %v969
    %1034 = vst [vmem:[#allocation2 + $0x4c] sm:$0xf] %v970
    %1035 = vst [vmem:[#allocation2 + $0x50] sm:$0xf] %v971
    %1036 = vst [vmem:[#allocation2 + $0x54] sm:$0xf] %v972
    %1037 = vst [vmem:[#allocation2 + $0x58] sm:$0xf] %v973
    %1038 = vst [vmem:[#allocation2 + $0x5c] sm:$0xf] %v974
    %1039 = vst [vmem:[#allocation2 + $0x60] sm:$0xf] %v975
    %1040 = vst [vmem:[#allocation2 + $0x64] sm:$0xf] %v976
    %1041 = vst [vmem:[#allocation2 + $0x68] sm:$0xf] %v977
    %1042 = vst [vmem:[#allocation2 + $0x6c] sm:$0xf] %v978
    %1043 = vst [vmem:[#allocation2 + $0x70] sm:$0xf] %v979
    %1044 = vst [vmem:[#allocation2 + $0x74] sm:$0xf] %v980
    %1045 = vst [vmem:[#allocation2 + $0x78] sm:$0xf] %v981
    %1046 = vst [vmem:[#allocation2 + $0x7c] sm:$0xf] %v982
    // Predicated region
    $region22: #{tpu_custom_call.1} parent=1 // pred_check
      _
    $region23: #{tpu_custom_call.1} parent=1 // pred_check_branch
      %1048 = sbr.rel (0) target = $region25
    $region24: #{tpu_custom_call.1} parent=1 // pred_region
      %s1050 = ssub.s32 2048, 2048
      %1051 = vsyncadd [#allocation3], %s1050
      %s1052 = sshll.u32 [#allocation2], 4
      %s1053 = int_to_ptr.vmem [resolvable:$true] %s1052
      %1058 = dma.vmem_to_hbm [thread:$0]  %s1053, 2048, %s5, [#allocation3], 64, 64, 4
    $region25: #{tpu_custom_call.1} parent=1 // pred_fallthru
      _
    // Predicated region
    $region26: #{tpu_custom_call.1} parent=1 // pred_check
      _
    $region27: #{tpu_custom_call.1} parent=1 // pred_check_branch
      %1060 = sbr.rel (0) target = $region29
    $region28: #{tpu_custom_call.1} parent=1 // pred_region
      %1061 = dma.done [#allocation3], 2048
    $region29: #{tpu_custom_call.1} parent=1 // pred_fallthru
      _
    %1062 = vsyncpa [#allocation3], 1

</llo_original>
